<compile_context>
chip_gen: v7x
topology: tpu7x:2x2x1
jax: 0.10.0
libtpu: 0.0.40
codegen_flags: <defaults>
</compile_context>

<pallas_src>
import functools

import jax
import jax.numpy as jnp
from jax.experimental import pallas as pl
from jax.experimental.pallas import tpu as pltpu


# ---------------------------------------------------------------------------
# Small helpers
# ---------------------------------------------------------------------------

def _cdiv(a, b):
    return -(-a // b)


def _round_up(x, m):
    return _cdiv(x, m) * m


def _sublanes(itemsize):
    # sublane packing: 8 rows for 4-byte, 16 for 2-byte, 32 for 1-byte dtypes
    return 32 // itemsize


def _device_config():
    """Per-generation block budget / TensorCore count / VMEM-limit ceiling."""
    kind = ""
    try:
        kind = jax.devices()[0].device_kind.lower()
    except Exception:
        pass
    if "v5 lite" in kind or "v5e" in kind or "v5lite" in kind:
        # ~820 GB/s HBM, 16 MiB scoped-VMEM default: 2 MiB blocks are already ~90% roofline.
        return {"target": 2 << 20, "max": 4 << 20, "num_tc": 1, "vmem_cap": 64 << 20}
    if "7" in kind:
        # v7x: 3.2 TB/s HBM but only 64 MiB physical VMEM per TC and 2 TCs.
        return {"target": 4 << 20, "max": 8 << 20, "num_tc": 2, "vmem_cap": 40 << 20}
    if "v6" in kind:
        return {"target": 4 << 20, "max": 8 << 20, "num_tc": 1, "vmem_cap": 96 << 20}
    # v4 / v5p / unknown: conservative defaults.
    return {"target": 2 << 20, "max": 4 << 20, "num_tc": 1, "vmem_cap": 64 << 20}


def _padded_block_bytes(block_shape, itemsize):
    """VMEM bytes of one block after (sublane, lane) tiling/padding."""
    sub = _sublanes(itemsize)
    dims = list(block_shape)
    if len(dims) == 1:
        return _round_up(dims[0], 128) * itemsize * sub
    b = _round_up(dims[-2], sub) * _round_up(dims[-1], 128) * itemsize
    for d in dims[:-2]:
        b *= d
    return b


def _vmem_limit_bytes(in_pad, out_pad, block_elems, cap):
    # 2x double-buffered input + 2x output (padded layout) + in-kernel f32 temps + slack.
    fp = 2 * in_pad + 2 * out_pad + 2 * block_elems * 4 + (2 << 20)
    return int(min(max(fp, 16 << 20), cap))


# ---------------------------------------------------------------------------
# Kernels
# ---------------------------------------------------------------------------

def _texp_kernel(x_ref, o_ref, *, tilt, reduce_axes):
    """exp(tilt*x) normalized by its sum over `reduce_axes` (fully inside one block)."""
    e = jnp.exp(tilt * x_ref[...].astype(jnp.float32))
    denom = jnp.sum(e, axis=reduce_axes, keepdims=True)
    # Approx reciprocal on the EUP slot (off the VPU critical path) + one Newton step
    # to recover ~f32 accuracy on the tiny denominator tile.
    r = pl.reciprocal(denom, approx=True)
    r = r * (2.0 - denom * r)
    o_ref[...] = (e * r).astype(o_ref.dtype)
    # TODO(synk): for bf16/fp8 inputs `e` could be narrowed before the final multiply to
    # halve VPU bytes; kept in f32 here and accounted for in the VMEM budget instead.


def _partial_denom_kernel(x_ref, p_ref, *, tilt, hw_total, t_hw):
    """Two-pass path, pass 1: per-(batch, hw-tile) sum of exp(tilt*x)."""
    e = jnp.exp(tilt * x_ref[...].astype(jnp.float32))             # (1, C, t_hw)
    col = pl.program_id(1) * t_hw + jax.lax.broadcasted_iota(jnp.int32, e.shape, 2)
    e = jnp.where(col < hw_total, e, 0.0)                           # mask ragged tail
    s = jnp.sum(e, axis=2, keepdims=True)                           # lane reduce  -> (1, C, 1)
    s = jnp.sum(s, axis=1, keepdims=True)                           # sublane reduce -> (1, 1, 1)
    p_ref[...] = jnp.broadcast_to(s.reshape(1, 1, 1, 1), p_ref.shape)


def _scale_kernel(r_ref, x_ref, o_ref, *, tilt):
    """Two-pass path, pass 2: exp(tilt*x) * precomputed per-batch reciprocal (SMEM)."""
    r = r_ref[pl.program_id(0)]
    e = jnp.exp(tilt * x_ref[...].astype(jnp.float32))
    o_ref[...] = (e * r).astype(o_ref.dtype)


# ---------------------------------------------------------------------------
# Tile selection
# ---------------------------------------------------------------------------

def _choose_hw_tile(C, HW, itemsize, target_bytes):
    """Lane tile (multiple of 128, or the full HW) for (., C, t_hw) blocks."""
    c_pad = _round_up(C, _sublanes(itemsize))
    if HW <= 128:
        return HW
    per_128_cols = c_pad * 128 * itemsize
    t = max(1, target_bytes // per_128_cols) * 128
    if t >= HW:
        return HW
    return int(t)   # ragged final block is fine (Pallas masks it); no divisor requirement


def _choose_channel_tiles(N, C, HW, itemsize, target_bytes, num_tc):
    """(tb, t_hw) for the across-filters-only (per-column channel softmax) mode."""
    c_pad = _round_up(C, _sublanes(itemsize))
    t_hw = _choose_hw_tile(C, HW, itemsize, target_bytes)
    block_col_bytes = c_pad * _round_up(t_hw, 128) * itemsize       # budget vs PADDED size
    tb = min(N, max(1, target_bytes // block_col_bytes))
    # Keep >=2 grid steps so both v7x TensorCores stream.
    if num_tc > 1 and _cdiv(N, tb) * _cdiv(HW, t_hw) < 2:
        if N > 1:
            tb = _cdiv(N, 2)
        elif t_hw == HW and HW >= 256:
            t_hw = max(128, (HW // 2) // 128 * 128)
    return tb, t_hw


def _choose_full2d_tb(N, row_pad_bytes, target_bytes, num_tc):
    """Batch tile for the flattened (N, C*HW) full-reduction mode."""
    tb = max(1, target_bytes // max(1, row_pad_bytes))
    if num_tc > 1 and N >= 2 * num_tc:
        tb = min(tb, _cdiv(N, 2 * num_tc))          # feed both v7x TensorCores
    if tb >= N:
        return N
    tb = (tb // 8) * 8                              # second-to-last block dim: multiple of 8
    if tb < 8:
        return N if N <= 8 else 8
    return min(tb, N)


# ---------------------------------------------------------------------------
# Public wrapper
# ---------------------------------------------------------------------------

def texp_normalization(x, tilt: float = 1.0, texp_across_filts_only: bool = True, *,
                       _block_target_bytes=None, _max_block_bytes=None):
    """x: (N, C, H, W) float array. Returns array of same shape/dtype."""
    N, C, H, W = x.shape
    HW = H * W
    itemsize = jnp.dtype(x.dtype).itemsize
    tilt = float(tilt)

    cfg = _device_config()
    target = int(_block_target_bytes or cfg["target"])
    max_block = int(_max_block_bytes or cfg["max"])
    num_tc = cfg["num_tc"]
    vmem_cap = cfg["vmem_cap"]
    sub = _sublanes(itemsize)
    c_pad = _round_up(C, sub)

    # ---------------- mode 1: softmax across channels only ----------------
    if texp_across_filts_only:
        x2 = x.reshape(N, C, HW)
        tb, t_hw = _choose_channel_tiles(N, C, HW, itemsize, target, num_tc)
        block = (tb, C, t_hw)
        in_pad = _padded_block_bytes(block, itemsize)
        limit = _vmem_limit_bytes(in_pad, in_pad, tb * C * t_hw, vmem_cap)
        kernel = functools.partial(_texp_kernel, tilt=tilt, reduce_axes=(1,))
        out = pl.pallas_call(
            kernel,
            out_shape=jax.ShapeDtypeStruct((N, C, HW), x.dtype),
            grid_spec=pltpu.PrefetchScalarGridSpec(
                num_scalar_prefetch=0,
                grid=(_cdiv(N, tb), _cdiv(HW, t_hw)),
                in_specs=[pl.BlockSpec(block, lambda i, j: (i, 0, j))],
                out_specs=pl.BlockSpec(block, lambda i, j: (i, 0, j))),
            compiler_params=pltpu.CompilerParams(
                dimension_semantics=("parallel", "parallel"),
                vmem_limit_bytes=limit),
        )(x2)
        return out.reshape(N, C, H, W)

    # ---------------- mode 2: full reduction over (C, H, W) ----------------
    CHW = C * HW
    row_lane_pad = _round_up(CHW, 128) * itemsize           # (., CHW) lane-padded row
    row3d_pad = c_pad * _round_up(HW, 128) * itemsize        # (1, C, HW) padded row

    if sub * row_lane_pad <= max_block:
        # Path 1: lane-dense 2D layout, single lane reduce per row.
        x2 = x.reshape(N, CHW)
        tb = _choose_full2d_tb(N, row_lane_pad, target, num_tc)
        block = (tb, CHW)
        in_pad = _padded_block_bytes(block, itemsize)
        limit = _vmem_limit_bytes(in_pad, in_pad, tb * CHW, vmem_cap)
        kernel = functools.partial(_texp_kernel, tilt=tilt, reduce_axes=(1,))
        out = pl.pallas_call(
            kernel,
            out_shape=jax.ShapeDtypeStruct((N, CHW), x.dtype),
            grid_spec=pltpu.PrefetchScalarGridSpec(
                num_scalar_prefetch=0,
                grid=(_cdiv(N, tb),),
                in_specs=[pl.BlockSpec(block, lambda i: (i, 0))],
                out_specs=pl.BlockSpec(block, lambda i: (i, 0))),
            compiler_params=pltpu.CompilerParams(
                dimension_semantics=("parallel",),
                vmem_limit_bytes=limit),
        )(x2)
        return out.reshape(N, C, H, W)

    if row3d_pad <= max_block:
        # Path 2: one or more full rows per block as (tb, C, HW); leading dim carries no
        # (8,128) constraint so tb may be 1.  Bounded by `row3d_pad <= max_block`.
        x2 = x.reshape(N, C, HW)
        tb = max(1, target // row3d_pad)
        if num_tc > 1 and N >= 2 * num_tc:
            tb = min(tb, _cdiv(N, 2 * num_tc))
        tb = min(tb, N)
        block = (tb, C, HW)
        in_pad = _padded_block_bytes(block, itemsize)
        limit = _vmem_limit_bytes(in_pad, in_pad, tb * C * HW, vmem_cap)
        kernel = functools.partial(_texp_kernel, tilt=tilt, reduce_axes=(1, 2))
        out = pl.pallas_call(
            kernel,
            out_shape=jax.ShapeDtypeStruct((N, C, HW), x.dtype),
            grid_spec=pltpu.PrefetchScalarGridSpec(
                num_scalar_prefetch=0,
                grid=(_cdiv(N, tb),),
                in_specs=[pl.BlockSpec(block, lambda i: (i, 0, 0))],
                out_specs=pl.BlockSpec(block, lambda i: (i, 0, 0))),
            compiler_params=pltpu.CompilerParams(
                dimension_semantics=("parallel",),
                vmem_limit_bytes=limit),
        )(x2)
        return out.reshape(N, C, H, W)

    # Path 3: rows too large for a single block -> two-pass split reduction.
    x2 = x.reshape(N, C, HW)
    t_hw = _choose_hw_tile(C, HW, itemsize, target)
    n_hw = _cdiv(HW, t_hw)
    in_block = (1, C, t_hw)
    in_pad = _padded_block_bytes(in_block, itemsize)
    p_block = (1, 1, 8, 128)
    p_pad = _padded_block_bytes(p_block, 4)

    # Pass 1: per-(batch, hw-tile) partial sums of exp(tilt*x).
    limit1 = _vmem_limit_bytes(in_pad, p_pad, C * t_hw, vmem_cap)
    partials = pl.pallas_call(
        functools.partial(_partial_denom_kernel, tilt=tilt, hw_total=HW, t_hw=t_hw),
        out_shape=jax.ShapeDtypeStruct((N, n_hw, 8, 128), jnp.float32),
        grid_spec=pltpu.PrefetchScalarGridSpec(
            num_scalar_prefetch=0,
            grid=(N, n_hw),
            in_specs=[pl.BlockSpec(in_block, lambda b, h: (b, 0, h))],
            out_specs=pl.BlockSpec(p_block, lambda b, h: (b, h, 0, 0))),
        compiler_params=pltpu.CompilerParams(
            dimension_semantics=("parallel", "parallel"),
            vmem_limit_bytes=limit1),
    )(x2)

    # Tiny cross-tile reduction + exact reciprocal in plain JAX (negligible work).
    denom = jnp.sum(partials[:, :, 0, 0], axis=1)               # (N,) f32
    recip = (1.0 / denom).astype(jnp.float32)

    # Pass 2: stream input again, multiply by the per-batch reciprocal from SMEM.
    limit2 = _vmem_limit_bytes(in_pad, in_pad, C * t_hw, vmem_cap)
    out = pl.pallas_call(
        functools.partial(_scale_kernel, tilt=tilt),
        out_shape=jax.ShapeDtypeStruct((N, C, HW), x.dtype),
        grid_spec=pltpu.PrefetchScalarGridSpec(
            num_scalar_prefetch=0,
            grid=(N, n_hw),
            in_specs=[pl.BlockSpec(memory_space=pltpu.MemorySpace.SMEM),
                      pl.BlockSpec(in_block, lambda b, h: (b, 0, h))],
            out_specs=pl.BlockSpec(in_block, lambda b, h: (b, 0, h))),
        compiler_params=pltpu.CompilerParams(
            dimension_semantics=("parallel", "parallel"),
            vmem_limit_bytes=limit2),
    )(recip, x2)
    return out.reshape(N, C, H, W)


# ---------------------------------------------------------------------------
# Reference + self-test
# ---------------------------------------------------------------------------

def _reference(x, tilt, filts_only):
    e = jnp.exp(tilt * x)
    if filts_only:
        return e / jnp.sum(e, axis=1, keepdims=True)
    return e / jnp.sum(e, axis=(1, 2, 3), keepdims=True)


if __name__ == "__main__":
    key = jax.random.PRNGKey(0)
    tilt = 1.5

    # Primary shape from the module spec.
    N, C, H, W = 2, 4, 16, 16
    x = jax.random.normal(key, (N, C, H, W), dtype=jnp.float32)

    # Mode 1: softmax across channels only (default).
    y1 = jax.block_until_ready(texp_normalization(x, tilt=tilt, texp_across_filts_only=True))
    assert jnp.allclose(y1, _reference(x, tilt, True), atol=1e-5, rtol=1e-5), "filts_only mismatch"

    # Mode 2: normalization across channels and spatial dims (lane-dense 2D path).
    y2 = jax.block_until_ready(texp_normalization(x, tilt=tilt, texp_across_filts_only=False))
    assert jnp.allclose(y2, _reference(x, tilt, False), atol=1e-5, rtol=1e-5), "full-reduce mismatch"

    # Small shape with non-128-multiple HW and odd N/C.
    x3 = jax.random.normal(jax.random.PRNGKey(1), (3, 5, 4, 4), dtype=jnp.float32)
    y3a = jax.block_until_ready(texp_normalization(x3, tilt=0.7, texp_across_filts_only=True))
    y3b = jax.block_until_ready(texp_normalization(x3, tilt=0.7, texp_across_filts_only=False))
    assert jnp.allclose(y3a, _reference(x3, 0.7, True), atol=1e-5, rtol=1e-5)
    assert jnp.allclose(y3b, _reference(x3, 0.7, False), atol=1e-5, rtol=1e-5)

    # Force the bounded 3D full-reduction path (tiny block budget).
    y4 = jax.block_until_ready(texp_normalization(
        x, tilt=tilt, texp_across_filts_only=False,
        _block_target_bytes=8192, _max_block_bytes=16384))
    assert jnp.allclose(y4, _reference(x, tilt, False), atol=1e-5, rtol=1e-5)

    # Force the two-pass split-reduction path and ragged 128-lane tiles (HW=200).
    x5 = jax.random.normal(jax.random.PRNGKey(2), (2, 4, 10, 20), dtype=jnp.float32)
    y5a = jax.block_until_ready(texp_normalization(
        x5, tilt=0.9, texp_across_filts_only=True,
        _block_target_bytes=1024, _max_block_bytes=2048))
    y5b = jax.block_until_ready(texp_normalization(
        x5, tilt=0.9, texp_across_filts_only=False,
        _block_target_bytes=1024, _max_block_bytes=2048))
    assert jnp.allclose(y5a, _reference(x5, 0.9, True), atol=1e-5, rtol=1e-5)
    assert jnp.allclose(y5b, _reference(x5, 0.9, False), atol=1e-5, rtol=1e-5)

    print("KERNEL_OK")
</pallas_src>

<mosaic_0001>
module attributes {stable_mosaic.version = 11 : i64} {
  func.func @_texp_kernel(%arg0: i32, %arg1: i32, %arg2: memref<2x4x256xf32, #tpu.memory_space<vmem>>, %arg3: memref<2x4x256xf32, #tpu.memory_space<vmem>>) attributes {dimension_semantics = [#tpu.dimension_semantics<parallel>, #tpu.dimension_semantics<parallel>], iteration_bounds = array<i64: 1, 1>, scalar_prefetch = 0 : i64, scratch_operands = 0 : i64, tpu.core_type = #tpu.core_type<tc>, window_params = [{transform_indices = @transform_0, window_bounds = array<i64: 2, 4, 256>}, {transform_indices = @transform_1, window_bounds = array<i64: 2, 4, 256>}]} {
    %c0 = arith.constant 0 : index
    %c0_0 = arith.constant 0 : index
    %c0_1 = arith.constant 0 : index
    %0 = vector.load %arg2[%c0, %c0_0, %c0_1] : memref<2x4x256xf32, #tpu.memory_space<vmem>>, vector<2x4x256xf32>
    %cst = arith.constant 1.500000e+00 : f32
    %1 = vector.broadcast %cst : f32 to vector<2x4x256xf32>
    %2 = arith.mulf %1, %0 : vector<2x4x256xf32>
    %3 = math.exp %2 : vector<2x4x256xf32>
    %cst_2 = arith.constant dense<0.000000e+00> : vector<2x256xf32>
    %4 = vector.multi_reduction <add>, %3, %cst_2 [1] : vector<2x4x256xf32> to vector<2x256xf32>
    %5 = vector.shape_cast %4 : vector<2x256xf32> to vector<2x1x256xf32>
    %6 = tpu.reciprocal %5 {approx = true} : vector<2x1x256xf32> -> vector<2x1x256xf32>
    %7 = arith.mulf %5, %6 : vector<2x1x256xf32>
    %cst_3 = arith.constant 2.000000e+00 : f32
    %8 = vector.broadcast %cst_3 : f32 to vector<2x1x256xf32>
    %9 = arith.subf %8, %7 : vector<2x1x256xf32>
    %10 = arith.mulf %6, %9 : vector<2x1x256xf32>
    %11 = vector.broadcast %10 : vector<2x1x256xf32> to vector<2x4x256xf32>
    %12 = arith.mulf %3, %11 : vector<2x4x256xf32>
    %c0_4 = arith.constant 0 : index
    %c0_5 = arith.constant 0 : index
    %c0_6 = arith.constant 0 : index
    %13 = vector.load %arg3[%c0_4, %c0_5, %c0_6] : memref<2x4x256xf32, #tpu.memory_space<vmem>>, vector<2x4x256xf32>
    tpu.vector_store %arg3[%c0_4, %c0_5, %c0_6], %12 {strides = array<i32>} : memref<2x4x256xf32, #tpu.memory_space<vmem>>, vector<2x4x256xf32>,
    return
  }
  func.func @transform_0(%arg0: i32, %arg1: i32) -> (i32, i32, i32) {
    %c0_i32 = arith.constant 0 : i32
    %c0_i32_0 = arith.constant 0 : i32
    return %arg0, %c0_i32, %arg1 : i32, i32, i32
  }
  func.func @transform_1(%arg0: i32, %arg1: i32) -> (i32, i32, i32) {
    %c0_i32 = arith.constant 0 : i32
    %c0_i32_0 = arith.constant 0 : i32
    return %arg0, %c0_i32, %arg1 : i32, i32, i32
  }
}

</mosaic_0001>

<llo_original>
// kernel: tpu_custom_call.1
$region0: #{tpu_custom_call.1}
  #allocation0 [shape = 'u32[]', space=smem, size = 0x4, offset = 0x4, fixed_abs, tag = 'smem constant byte address 0x4 - core index']
  #allocation1 [shape = 'u32[144,128]{1,0:T(1,128)}', space=vmem, size = 0x12000, scoped, tag = 'internal scratch']
  %s0 = inlined_call_operand.hbm [shape: f32[2,4,256], index: 0, kind: input, shape index: {}]
  %s1 = inlined_call_operand.hbm [shape: f32[2,4,256], index: 1, kind: output, shape index: {}]
  %s2 = sld [smem:[#allocation0]]
  $region18: #{tpu_custom_call.1} parent=0
    _
  %s4 = ssub.s32 1, %s2
  %s5 = scalar_select 0, %s4, %s2
  $region1: #{tpu_custom_call.1} parent=0
    #allocation2 [shape = 'u8[8192]{0}', space=vmem, size = 0x2000, scoped, tag = 'input window, operand 0, single buffered']
    #allocation3 [shape = 's32[1]{0}', space=sflag, size = 0x4, scoped, tag = 'scoped memory for tpu_custom_call.1']
    #allocation4 [shape = 's32[1]{0}', space=sflag, size = 0x4, scoped, tag = 'scoped memory for tpu_custom_call.1']
    #allocation5 [shape = 'u8[8192]{0}', space=vmem, size = 0x2000, scoped, tag = 'output window, operand 0, single buffered']
    %6 = vsyncpa [#allocation3], 0
    %7 = vsyncpa [#allocation4], 0
    // Predicated region
    $region2: #{tpu_custom_call.1} parent=1 // pred_check
      _
    $region3: #{tpu_custom_call.1} parent=1 // pred_check_branch
      %9 = sbr.rel (0) target = $region5
    $region4: #{tpu_custom_call.1} parent=1 // pred_region
      %s11 = ssub.s32 256, 256
      %12 = vsyncadd [#allocation3], %s11
      %s13 = sshll.u32 [#allocation2], 4
      %s14 = int_to_ptr.vmem [resolvable:$true] %s13
      %19 = dma.hbm_to_vmem [thread:$0]  %s0, 256, %s14, [#allocation3], 128, 128, 8
    $region5: #{tpu_custom_call.1} parent=1 // pred_fallthru
      _
    // Predicated region
    $region6: #{tpu_custom_call.1} parent=1 // pred_check
      _
    $region7: #{tpu_custom_call.1} parent=1 // pred_check_branch
      %21 = sbr.rel (0) target = $region9
    $region8: #{tpu_custom_call.1} parent=1 // pred_region
      %22 = dma.done [#allocation3], 256
    $region9: #{tpu_custom_call.1} parent=1 // pred_fallthru
      _
    %v23 = vld [vmem:[#allocation2] sm:$0xff]
    %v24 = vld [vmem:[#allocation2 + $0x8] sm:$0xff]
    %v25 = vmul.f32 %v23, 1.5
    %v26 = vmul.f32 %v24, 1.5
    %v27 = vmul.f32 %v25, 1.442695
    %v28 = vpow.pop %v27
    %v29 = vmul.f32 %v26, 1.442695
    %v30 = vpow.pop %v29
    %v33 = vcombine.high %v28, %v28
    %v34 = vcombine.high %v30, %v30
    %vm37 = vcmask 1043456
    %v38 = vsel %vm37, %v28, 0.0
    %v39 = vrot.slane %v38, 4
    %v40 = vadd.f32 %v38, %v39
    %v41 = vrot.slane %v40, 2
    %v42 = vadd.f32 %v40, %v41
    %v43 = vrot.slane %v42, 1
    %v44 = vadd.f32 %v42, %v43
    %v45 = vsel %vm37, %v33, 0.0
    %v46 = vrot.slane %v45, 4
    %v47 = vadd.f32 %v45, %v46
    %v48 = vrot.slane %v47, 2
    %v49 = vadd.f32 %v47, %v48
    %v50 = vrot.slane %v49, 1
    %v51 = vadd.f32 %v49, %v50
    %v52 = vsel %vm37, %v30, 0.0
    %v53 = vrot.slane %v52, 4
    %v54 = vadd.f32 %v52, %v53
    %v55 = vrot.slane %v54, 2
    %v56 = vadd.f32 %v54, %v55
    %v57 = vrot.slane %v56, 1
    %v58 = vadd.f32 %v56, %v57
    %v59 = vsel %vm37, %v34, 0.0
    %v60 = vrot.slane %v59, 4
    %v61 = vadd.f32 %v59, %v60
    %v62 = vrot.slane %v61, 2
    %v63 = vadd.f32 %v61, %v62
    %v64 = vrot.slane %v63, 1
    %v65 = vadd.f32 %v63, %v64
    %v66 = vrcp.pop %v44
    %v67 = vrcp.pop %v51
    %v68 = vrcp.pop %v58
    %v69 = vrcp.pop %v65
    %v70 = vmul.f32 %v44, %v66
    %v71 = vmul.f32 %v51, %v67
    %v72 = vmul.f32 %v58, %v68
    %v73 = vmul.f32 %v65, %v69
    %v74 = vsub.f32 2.0, %v70
    %v75 = vsub.f32 2.0, %v71
    %v76 = vsub.f32 2.0, %v72
    %v77 = vsub.f32 2.0, %v73
    %v78 = vmul.f32 %v66, %v74
    %v79 = vmul.f32 %v67, %v75
    %v80 = vmul.f32 %v68, %v76
    %v81 = vmul.f32 %v69, %v77
    %v86 = vcombine.low %v78, %v79
    %v87 = vcombine.low %v80, %v81
    %v90 = vmul.f32 %v28, %v86
    %v91 = vmul.f32 %v30, %v87
    %92 = vst [vmem:[#allocation5] sm:$0xff] %v90
    %93 = vst [vmem:[#allocation5 + $0x8] sm:$0xff] %v91
    // Predicated region
    $region10: #{tpu_custom_call.1} parent=1 // pred_check
      _
    $region11: #{tpu_custom_call.1} parent=1 // pred_check_branch
      %95 = sbr.rel (0) target = $region13
    $region12: #{tpu_custom_call.1} parent=1 // pred_region
      %s97 = ssub.s32 256, 256
      %98 = vsyncadd [#allocation4], %s97
      %s99 = sshll.u32 [#allocation5], 4
      %s100 = int_to_ptr.vmem [resolvable:$true] %s99
      %105 = dma.vmem_to_hbm [thread:$0]  %s100, 256, %s1, [#allocation4], 128, 128, 8
    $region13: #{tpu_custom_call.1} parent=1 // pred_fallthru
      _
    // Predicated region
    $region14: #{tpu_custom_call.1} parent=1 // pred_check
      _
    $region15: #{tpu_custom_call.1} parent=1 // pred_check_branch
      %107 = sbr.rel (0) target = $region17
    $region16: #{tpu_custom_call.1} parent=1 // pred_region
      %108 = dma.done [#allocation4], 256
    $region17: #{tpu_custom_call.1} parent=1 // pred_fallthru
      _
    %109 = vsyncpa [#allocation3], 1
    %110 = vsyncpa [#allocation4], 1

</llo_original>
